<compile_context>
chip_gen: v6e
topology: v6e:2x2x1
jax: 0.10.0
libtpu: 0.0.40
codegen_flags: <defaults>
</compile_context>

<pallas_src>
import jax
import jax.numpy as jnp
from jax.experimental import pallas as pl
from jax.experimental.pallas import tpu as pltpu

LN_EPS = 1e-5  # PyTorch nn.LayerNorm default


# --------------------------------------------------------------------------
# Kernel A (preferred): weight-resident fused Linear -> LayerNorm -> mask.
# Grid: (row_tiles,). The weight BlockSpec has a constant index_map, so Pallas
# DMAs it from HBM exactly once and keeps it resident across all row tiles.
# --------------------------------------------------------------------------
def _proj_ln_mask_resident_kernel(x_ref, w_ref, g_ref, b_ref, m_ref, o_ref):
    # x_ref : (tm, D)       rows of flattened (B*S, d_model) embeddings
    # w_ref : (D, C)        full projection weight (transposed vs. PyTorch)
    # g_ref : (1, C) f32    LayerNorm gamma
    # b_ref : (1, C) f32    LayerNorm beta
    # m_ref : (tm, 1) f32   attention mask per row (0.0 / 1.0)
    # o_ref : (tm, C)       output context rows
    y = jnp.dot(x_ref[...], w_ref[...], preferred_element_type=jnp.float32)
    mean = jnp.mean(y, axis=-1, keepdims=True)
    centered = y - mean
    var = jnp.mean(centered * centered, axis=-1, keepdims=True)
    y_ln = centered * jax.lax.rsqrt(var + LN_EPS) * g_ref[...] + b_ref[...]
    # context[mask == 0] = 0. All ops are row-wise, so garbage rows from a
    # partial tail tile stay confined to dropped out-of-bounds output rows.
    o_ref[...] = (y_ln * m_ref[...]).astype(o_ref.dtype)


# --------------------------------------------------------------------------
# Kernel B (fallback): K-tiled accumulator path for weights too big for VMEM.
# Grid: (row_tiles, k_tiles); output BlockSpec constant along k (accumulator).
# --------------------------------------------------------------------------
def _proj_ln_mask_ktiled_kernel(x_ref, w_ref, g_ref, b_ref, m_ref, o_ref,
                                acc_ref):
    k = pl.program_id(1)

    @pl.when(k == 0)
    def _init():
        acc_ref[...] = jnp.zeros_like(acc_ref)

    # MXU matmul in the operands' native dtype (bf16/f32), f32 accumulation.
    acc_ref[...] += jnp.dot(x_ref[...], w_ref[...],
                            preferred_element_type=jnp.float32)

    @pl.when(k == pl.num_programs(1) - 1)
    def _epilogue():
        y = acc_ref[...]
        mean = jnp.mean(y, axis=-1, keepdims=True)
        centered = y - mean
        var = jnp.mean(centered * centered, axis=-1, keepdims=True)
        y_ln = centered * jax.lax.rsqrt(var + LN_EPS) * g_ref[...] + b_ref[...]
        o_ref[...] = (y_ln * m_ref[...]).astype(o_ref.dtype)


# --------------------------------------------------------------------------
# Tiling / VMEM helpers
# --------------------------------------------------------------------------
def _round_up(n, m):
    return ((n + m - 1) // m) * m


def _sublane_pack(dtype):
    # Sublane packing factor: 8 for 32-bit, 16 for bf16, 32 for 8-bit dtypes.
    return {4: 8, 2: 16, 1: 32}.get(jnp.dtype(dtype).itemsize, 8)


def _device_vmem_budget():
    """Per-core VMEM budget with headroom, clamped to the real capacity."""
    try:
        cap = int(pltpu.get_tpu_info().vmem_capacity_bytes)
    except Exception:
        cap = 64 * 1024 * 1024  # conservative: v7x per-TensorCore VMEM
    return int(cap * 0.9)


def _pick_row_tile(rows, pack, target):
    tm = min(_round_up(target, pack), _round_up(rows, pack))
    # Guarantee >= 2 row tiles (when there is enough work) so the "parallel"
    # row axis can actually shard across v7x's two TensorCores.
    if rows > pack and pl.cdiv(rows, tm) < 2:
        tm = max(pack, _round_up(pl.cdiv(rows, 2), pack))
    return tm


def _pick_k_tile(d_model, k_tile_req):
    """d_model (reduction) tile for the fallback path: 256/128-multiple divisor."""
    if d_model <= k_tile_req or d_model % 128 != 0:
        return d_model
    for cand in (k_tile_req, 512, 256, 128):
        if cand <= d_model and d_model % cand == 0:
            return cand
    return d_model


def _resident_vmem_bytes(tm, D, C, cdt_size, out_size):
    return (2 * D * C * cdt_size        # weight (double-buffer alloc; streamed once)
            + 2 * tm * D * cdt_size     # x row tile
            + 2 * tm * C * out_size     # output row tile
            + 4 * C * 4                 # gamma + beta
            + 2 * tm * 4                # mask rows
            + 2 * tm * C * 4)           # f32 dot result / LN temporaries headroom


def _ktiled_vmem_bytes(tm, tk, C, cdt_size, out_size):
    return (2 * tm * tk * cdt_size      # x tile
            + 2 * tk * C * cdt_size     # weight slab
            + 4 * C * 4                 # gamma + beta
            + 2 * tm * 4                # mask rows
            + 2 * tm * C * out_size     # output tile
            + tm * C * 4)               # f32 accumulator scratch


# --------------------------------------------------------------------------
# Wrapper around pallas_call
# --------------------------------------------------------------------------
def _projection_pallas(embeddings, mask, w_t, gamma, beta, *,
                       row_tile=512, k_tile=512, force_ktiled=False):
    """embeddings: (B, S, d_model), mask: (B, S) -> context (B, S, ctx_dim)."""
    B, S, D = embeddings.shape
    Dw, C = w_t.shape
    assert Dw == D, (Dw, D)
    rows = B * S

    # Both matmul operands in the same (narrowest) dtype -> native MXU rate and
    # the smallest possible HBM weight stream; accumulation stays f32.
    cdt = (w_t.dtype
           if jnp.dtype(w_t.dtype).itemsize <= jnp.dtype(embeddings.dtype).itemsize
           else embeddings.dtype)
    x = embeddings.reshape(rows, D).astype(cdt)
    w = w_t.astype(cdt)
    m = mask.astype(jnp.float32).reshape(rows, 1)
    g = gamma.reshape(1, C).astype(jnp.float32)
    b = beta.reshape(1, C).astype(jnp.float32)

    out_dtype = embeddings.dtype
    cdt_size = jnp.dtype(cdt).itemsize
    out_size = jnp.dtype(out_dtype).itemsize
    pack = _sublane_pack(cdt)
    budget = _device_vmem_budget()

    tm = _pick_row_tile(rows, pack, row_tile)

    cost = pl.CostEstimate(
        flops=2 * rows * D * C,
        transcendentals=rows,  # one rsqrt per output row
        bytes_accessed=(rows * D * cdt_size + D * C * cdt_size
                        + rows * 4 + 2 * C * 4 + rows * C * out_size),
    )

    # ---- Path A: weight-resident, single weight stream ----------------------
    if not force_ktiled:
        tm_res = tm
        while (tm_res > pack
               and _resident_vmem_bytes(tm_res, D, C, cdt_size, out_size) > budget):
            tm_res = max(pack, _round_up(tm_res // 2, pack))
        need = _resident_vmem_bytes(tm_res, D, C, cdt_size, out_size)
        if need <= budget:
            vmem_limit = int(min(budget, max(32 * 1024 * 1024, int(1.25 * need))))
            grid = (pl.cdiv(rows, tm_res),)
            out = pl.pallas_call(
                _proj_ln_mask_resident_kernel,
                out_shape=jax.ShapeDtypeStruct((rows, C), out_dtype),
                grid_spec=pltpu.PrefetchScalarGridSpec(
                    num_scalar_prefetch=0,
                    grid=grid,
                    in_specs=[
                        pl.BlockSpec((tm_res, D), lambda i: (i, 0)),  # x rows
                        pl.BlockSpec((D, C), lambda i: (0, 0)),       # resident weight
                        pl.BlockSpec((1, C), lambda i: (0, 0)),       # gamma
                        pl.BlockSpec((1, C), lambda i: (0, 0)),       # beta
                        pl.BlockSpec((tm_res, 1), lambda i: (i, 0)),  # mask rows
                    ],
                    out_specs=pl.BlockSpec((tm_res, C), lambda i: (i, 0)),
                ),
                compiler_params=pltpu.CompilerParams(
                    dimension_semantics=("parallel",),
                    vmem_limit_bytes=vmem_limit,
                ),
                cost_estimate=cost,
            )(x, w, g, b, m)
            return out.reshape(B, S, C)

    # ---- Path B: K-tiled accumulator (weight too big for VMEM, e.g. v7x) -----
    tk = _pick_k_tile(D, k_tile)
    need = _ktiled_vmem_bytes(tm, tk, C, cdt_size, out_size)
    while tm > pack and need > budget:
        tm = max(pack, _round_up(tm // 2, pack))
        need = _ktiled_vmem_bytes(tm, tk, C, cdt_size, out_size)
    vmem_limit = int(min(budget, max(32 * 1024 * 1024, 2 * need)))
    grid = (pl.cdiv(rows, tm), pl.cdiv(D, tk))

    out = pl.pallas_call(
        _proj_ln_mask_ktiled_kernel,
        out_shape=jax.ShapeDtypeStruct((rows, C), out_dtype),
        grid_spec=pltpu.PrefetchScalarGridSpec(
            num_scalar_prefetch=0,
            grid=grid,
            in_specs=[
                pl.BlockSpec((tm, tk), lambda i, k: (i, k)),   # embeddings rows
                pl.BlockSpec((tk, C), lambda i, k: (k, 0)),    # weight slab
                pl.BlockSpec((1, C), lambda i, k: (0, 0)),     # gamma
                pl.BlockSpec((1, C), lambda i, k: (0, 0)),     # beta
                pl.BlockSpec((tm, 1), lambda i, k: (i, 0)),    # mask rows
            ],
            out_specs=pl.BlockSpec((tm, C), lambda i, k: (i, 0)),
            scratch_shapes=[pltpu.VMEM((tm, C), jnp.float32)],
        ),
        compiler_params=pltpu.CompilerParams(
            dimension_semantics=("parallel", "arbitrary"),
            vmem_limit_bytes=vmem_limit,
        ),
        cost_estimate=cost,
    )(x, w, g, b, m)
    return out.reshape(B, S, C)


# --------------------------------------------------------------------------
# Module-equivalent wrapper
# --------------------------------------------------------------------------
IMAGE_GENERATION_LABEL = "projection_base"
KEY_FRAME_GENERATION_LABEL = "projection_base"
INTERPOLATION_LABEL = "projection_interpolation"


def make_params(key, d_model, context_dim, dtype=jnp.float32):
    """Deterministic synthetic parameters for both projection heads.

    For production shapes pass dtype=jnp.bfloat16: the kernel casts both matmul
    operands to the weight dtype (f32 accumulation), halving the binding HBM
    weight stream and keeping the MXU on its native bf16 path.
    """
    k1, k2 = jax.random.split(key)

    def one_head(k):
        # nn.Linear(d_model, context_dim, bias=False): weight (context_dim, d_model)
        w = (jax.random.normal(k, (context_dim, d_model), jnp.float32)
             * (d_model ** -0.5)).astype(dtype)
        gamma = jnp.ones((context_dim,), dtype)
        beta = jnp.zeros((context_dim,), dtype)
        return {"w_t": w.T, "gamma": gamma, "beta": beta}  # store transposed weight

    return {
        "projection_base": one_head(k1),
        "projection_interpolation": one_head(k2),
    }


def t5_text_condition_encoder_forward(embeddings, attention_mask, params,
                                      model_type, *, truncate=True):
    """JAX/Pallas equivalent of T5TextConditionEncoder.forward, taking the
    T5 encoder's last_hidden_state (`embeddings`) as input.

    Returns (context, context_mask). With truncate=True (PyTorch semantics)
    the sequence axis is cut to mask.sum(-1).max()+1, which requires one
    blocking host sync; pass truncate=False inside jitted pipelines to avoid
    the sync (masked positions are already zeroed, so the full-length output
    is semantically equivalent for downstream attention).
    """
    # TODO(synk): the pretrained T5 encoder stack is not re-implemented; this
    # function consumes its last_hidden_state directly as `embeddings`.
    if model_type in (IMAGE_GENERATION_LABEL, KEY_FRAME_GENERATION_LABEL):
        p = params["projection_base"]
    elif model_type == INTERPOLATION_LABEL:
        p = params["projection_interpolation"]
    else:
        raise Exception(f"Unrecognized projection type {model_type}")

    if attention_mask is not None:
        context = _projection_pallas(
            embeddings, attention_mask, p["w_t"], p["gamma"], p["beta"]
        )
        context_mask = attention_mask
        if truncate:
            # Data-dependent output length (dynamic shape) — host glue.
            max_seq_length = int(jnp.max(jnp.sum(attention_mask, axis=-1))) + 1
            max_seq_length = min(max_seq_length, embeddings.shape[1])
            context = context[:, :max_seq_length]
            context_mask = attention_mask[:, :max_seq_length]
    else:
        ones_mask = jnp.ones(embeddings.shape[:2], jnp.float32)
        context = _projection_pallas(
            embeddings, ones_mask, p["w_t"], p["gamma"], p["beta"]
        )
        context_mask = jnp.ones(embeddings.shape[:-1], dtype=jnp.int32)

    return context, context_mask


# --------------------------------------------------------------------------
# Reference (pure jnp) for correctness checks
# --------------------------------------------------------------------------
def _reference(embeddings, attention_mask, p):
    y = embeddings.astype(jnp.float32) @ p["w_t"].astype(jnp.float32)
    mean = jnp.mean(y, axis=-1, keepdims=True)
    var = jnp.mean((y - mean) ** 2, axis=-1, keepdims=True)
    y = (y - mean) / jnp.sqrt(var + LN_EPS)
    y = y * p["gamma"].astype(jnp.float32) + p["beta"].astype(jnp.float32)
    y = y * attention_mask[..., None].astype(jnp.float32)
    return y.astype(embeddings.dtype)


if __name__ == "__main__":
    # Small shapes consistent with the module's forward:
    #   embeddings = encoder(...).last_hidden_state : (B, S, d_model)
    #   attention_mask                               : (B, S)
    B, S, D_MODEL, CTX_DIM = 2, 8, 32, 128

    key = jax.random.PRNGKey(0)
    k_emb, k_par = jax.random.split(key)

    embeddings = jax.random.normal(k_emb, (B, S, D_MODEL), jnp.float32)
    attention_mask = jnp.array(
        [[1, 1, 1, 1, 1, 0, 0, 0],
         [1, 1, 1, 0, 0, 0, 0, 0]], dtype=jnp.int32
    )

    # --- f32 path (weight-resident kernel), with PyTorch-style truncation ----
    params_f32 = make_params(k_par, D_MODEL, CTX_DIM, dtype=jnp.float32)
    context, context_mask = t5_text_condition_encoder_forward(
        embeddings, attention_mask, params_f32, IMAGE_GENERATION_LABEL
    )
    jax.block_until_ready(context)
    jax.block_until_ready(context_mask)

    max_len = min(int(jnp.max(jnp.sum(attention_mask, axis=-1))) + 1, S)
    ref = _reference(embeddings, attention_mask,
                     params_f32["projection_base"])[:, :max_len]
    assert context.shape == (B, max_len, CTX_DIM), context.shape
    assert context_mask.shape == (B, max_len), context_mask.shape
    assert jnp.allclose(context, ref, atol=1e-4, rtol=1e-4), "f32 mismatch"

    # --- bf16 weight-stream path (production config), no truncation ----------
    params_bf16 = make_params(k_par, D_MODEL, CTX_DIM, dtype=jnp.bfloat16)
    ctx_bf16, _ = t5_text_condition_encoder_forward(
        embeddings, attention_mask, params_bf16, INTERPOLATION_LABEL,
        truncate=False
    )
    jax.block_until_ready(ctx_bf16)
    p_i = params_bf16["projection_interpolation"]
    ref_bf16 = _reference(
        embeddings.astype(jnp.bfloat16).astype(jnp.float32),
        attention_mask,
        {k: v.astype(jnp.float32) for k, v in p_i.items()},
    )
    assert ctx_bf16.shape == (B, S, CTX_DIM), ctx_bf16.shape
    assert jnp.allclose(ctx_bf16, ref_bf16, atol=2e-2, rtol=2e-2), "bf16 mismatch"

    # --- K-tiled fallback path (used when the weight exceeds VMEM) -----------
    pb = params_f32["projection_base"]
    ctx_kt = _projection_pallas(embeddings, attention_mask,
                                pb["w_t"], pb["gamma"], pb["beta"],
                                force_ktiled=True)
    jax.block_until_ready(ctx_kt)
    ref_full = _reference(embeddings, attention_mask, pb)
    assert jnp.allclose(ctx_kt, ref_full, atol=1e-4, rtol=1e-4), "ktiled mismatch"

    print("KERNEL_OK")
</pallas_src>

<mosaic_0001>
module attributes {stable_mosaic.version = 11 : i64} {
  func.func @_proj_ln_mask_resident_kernel(%arg0: i32, %arg1: memref<8x32xf32, #tpu.memory_space<vmem>>, %arg2: memref<32x128xf32, #tpu.memory_space<vmem>>, %arg3: memref<1x128xf32, #tpu.memory_space<vmem>>, %arg4: memref<1x128xf32, #tpu.memory_space<vmem>>, %arg5: memref<8x1xf32, #tpu.memory_space<vmem>>, %arg6: memref<8x128xf32, #tpu.memory_space<vmem>>) attributes {dimension_semantics = [#tpu.dimension_semantics<parallel>], iteration_bounds = array<i64: 2>, scalar_prefetch = 0 : i64, scratch_operands = 0 : i64, tpu.core_type = #tpu.core_type<tc>, window_params = [{transform_indices = @transform_0, window_bounds = array<i64: 8, 32>}, {pipeline_mode = #tpu.pipeline_mode<synchronous>, transform_indices = @transform_1, window_bounds = array<i64: 32, 128>}, {pipeline_mode = #tpu.pipeline_mode<synchronous>, transform_indices = @transform_2, window_bounds = array<i64: 1, 128>}, {pipeline_mode = #tpu.pipeline_mode<synchronous>, transform_indices = @transform_3, window_bounds = array<i64: 1, 128>}, {transform_indices = @transform_4, window_bounds = array<i64: 8, 1>}, {transform_indices = @transform_5, window_bounds = array<i64: 8, 128>}]} {
    %c0 = arith.constant 0 : index
    %c0_0 = arith.constant 0 : index
    %0 = vector.load %arg1[%c0, %c0_0] : memref<8x32xf32, #tpu.memory_space<vmem>>, vector<8x32xf32>
    %c0_1 = arith.constant 0 : index
    %c0_2 = arith.constant 0 : index
    %1 = vector.load %arg2[%c0_1, %c0_2] : memref<32x128xf32, #tpu.memory_space<vmem>>, vector<32x128xf32>
    %cst = arith.constant dense<0.000000e+00> : vector<8x128xf32>
    %2 = tpu.matmul %0, %1, %cst {dimension_numbers = #tpu.dot_dimension_numbers<[1], [0], [0], [1], [0, 0, 1, 1], [], []>} : vector<8x32xf32>, vector<32x128xf32>, vector<8x128xf32> -> vector<8x128xf32>
    %cst_3 = arith.constant dense<0.000000e+00> : vector<8xf32>
    %3 = vector.multi_reduction <add>, %2, %cst_3 [1] : vector<8x128xf32> to vector<8xf32>
    %4 = vector.shape_cast %3 : vector<8xf32> to vector<8x1xf32>
    %cst_4 = arith.constant 1.280000e+02 : f32
    %5 = vector.broadcast %cst_4 : f32 to vector<8x1xf32>
    %6 = arith.divf %4, %5 : vector<8x1xf32>
    %7 = vector.broadcast %6 : vector<8x1xf32> to vector<8x128xf32>
    %8 = arith.subf %2, %7 : vector<8x128xf32>
    %9 = arith.mulf %8, %8 : vector<8x128xf32>
    %cst_5 = arith.constant dense<0.000000e+00> : vector<8xf32>
    %10 = vector.multi_reduction <add>, %9, %cst_5 [1] : vector<8x128xf32> to vector<8xf32>
    %11 = vector.shape_cast %10 : vector<8xf32> to vector<8x1xf32>
    %cst_6 = arith.constant 1.280000e+02 : f32
    %12 = vector.broadcast %cst_6 : f32 to vector<8x1xf32>
    %13 = arith.divf %11, %12 : vector<8x1xf32>
    %cst_7 = arith.constant 9.99999974E-6 : f32
    %14 = vector.broadcast %cst_7 : f32 to vector<8x1xf32>
    %15 = arith.addf %13, %14 : vector<8x1xf32>
    %16 = math.rsqrt %15 : vector<8x1xf32>
    %17 = vector.broadcast %16 : vector<8x1xf32> to vector<8x128xf32>
    %18 = arith.mulf %8, %17 : vector<8x128xf32>
    %c0_8 = arith.constant 0 : index
    %c0_9 = arith.constant 0 : index
    %19 = vector.load %arg3[%c0_8, %c0_9] : memref<1x128xf32, #tpu.memory_space<vmem>>, vector<1x128xf32>
    %20 = vector.broadcast %19 : vector<1x128xf32> to vector<8x128xf32>
    %21 = arith.mulf %18, %20 : vector<8x128xf32>
    %c0_10 = arith.constant 0 : index
    %c0_11 = arith.constant 0 : index
    %22 = vector.load %arg4[%c0_10, %c0_11] : memref<1x128xf32, #tpu.memory_space<vmem>>, vector<1x128xf32>
    %23 = vector.broadcast %22 : vector<1x128xf32> to vector<8x128xf32>
    %24 = arith.addf %21, %23 : vector<8x128xf32>
    %c0_12 = arith.constant 0 : index
    %c0_13 = arith.constant 0 : index
    %25 = vector.load %arg5[%c0_12, %c0_13] : memref<8x1xf32, #tpu.memory_space<vmem>>, vector<8x1xf32>
    %26 = vector.broadcast %25 : vector<8x1xf32> to vector<8x128xf32>
    %27 = arith.mulf %24, %26 : vector<8x128xf32>
    %c0_14 = arith.constant 0 : index
    %c0_15 = arith.constant 0 : index
    %28 = vector.load %arg6[%c0_14, %c0_15] : memref<8x128xf32, #tpu.memory_space<vmem>>, vector<8x128xf32>
    tpu.vector_store %arg6[%c0_14, %c0_15], %27 {strides = array<i32>} : memref<8x128xf32, #tpu.memory_space<vmem>>, vector<8x128xf32>,
    return
  }
  func.func @transform_0(%arg0: i32) -> (i32, i32) {
    %c0_i32 = arith.constant 0 : i32
    %c0_i32_0 = arith.constant 0 : i32
    return %arg0, %c0_i32 : i32, i32
  }
  func.func @transform_1(%arg0: i32) -> (i32, i32) {
    %c0_i32 = arith.constant 0 : i32
    %c0_i32_0 = arith.constant 0 : i32
    %c0_i32_1 = arith.constant 0 : i32
    return %c0_i32, %c0_i32_0 : i32, i32
  }
  func.func @transform_2(%arg0: i32) -> (i32, i32) {
    %c0_i32 = arith.constant 0 : i32
    %c0_i32_0 = arith.constant 0 : i32
    %c0_i32_1 = arith.constant 0 : i32
    return %c0_i32, %c0_i32_0 : i32, i32
  }
  func.func @transform_3(%arg0: i32) -> (i32, i32) {
    %c0_i32 = arith.constant 0 : i32
    %c0_i32_0 = arith.constant 0 : i32
    %c0_i32_1 = arith.constant 0 : i32
    return %c0_i32, %c0_i32_0 : i32, i32
  }
  func.func @transform_4(%arg0: i32) -> (i32, i32) {
    %c0_i32 = arith.constant 0 : i32
    %c0_i32_0 = arith.constant 0 : i32
    return %arg0, %c0_i32 : i32, i32
  }
  func.func @transform_5(%arg0: i32) -> (i32, i32) {
    %c0_i32 = arith.constant 0 : i32
    %c0_i32_0 = arith.constant 0 : i32
    return %arg0, %c0_i32 : i32, i32
  }
}

</mosaic_0001>

<llo_original>
// kernel: tpu_custom_call.1
$region0: #{tpu_custom_call.1}
  #allocation0 [shape = 'u32[]', space=smem, size = 0x4, offset = 0x4, fixed_abs, tag = 'smem constant byte address 0x4 - core index']
  #allocation1 [shape = 'u32[144,128]{1,0:T(1,128)}', space=vmem, size = 0x12000, scoped, tag = 'internal scratch']
  %s0 = inlined_call_operand.vmem [shape: f32[16,32], index: 0, kind: input, shape index: {}]
  %s1 = inlined_call_operand.hbm [shape: f32[32,128], index: 1, kind: input, shape index: {}]
  %s2 = inlined_call_operand.vmem [shape: f32[1,128], index: 2, kind: input, shape index: {}]
  %s3 = inlined_call_operand.vmem [shape: f32[1,128], index: 3, kind: input, shape index: {}]
  %s4 = inlined_call_operand.vmem [shape: f32[16,1], index: 4, kind: input, shape index: {}]
  %s5 = inlined_call_operand.hbm [shape: f32[16,128], index: 5, kind: output, shape index: {}]
  %s6 = sld [smem:[#allocation0]]
  $region57: #{tpu_custom_call.1} parent=0
    _
  %s8 = ssub.s32 1, %s6
  %s9 = scalar_select 0, %s8, %s6
  $region1: #{tpu_custom_call.1} parent=0
    #allocation2 [shape = 'u8[16384]{0}', space=vmem, size = 0x4000, scoped, tag = 'input window, operand 1, single buffered']
    #allocation3 [shape = 's32[2]{0}', space=sflag, size = 0x8, scoped, tag = 'scoped memory for tpu_custom_call.1']
    #allocation4 [shape = 's32[2]{0}', space=sflag, size = 0x8, scoped, tag = 'scoped memory for tpu_custom_call.1']
    #allocation5 [shape = 'u8[8192]{0}', space=vmem, size = 0x2000, scoped, tag = 'output window, operand 0']
    %10 = vsyncpa [#allocation3], 0
    %11 = vsyncpa [#allocation4], 0
    %s12 = scalar_lea.sflag [#allocation4], 1
    %13 = vsyncpa %s12, 0
    loop: start=0, step=1, limit=4
    $region2: #{tpu_custom_call.1} parent=1 // loop_pre_header
      _
    $region3: #{tpu_custom_call.1} parent=1 // loop_header
      %s15 = sphi 0, %s19
      %p16 = scmp.ge.s32.totalorder %s15, 4
      %s25 = sphi 0, %s27
      %s28 = sphi 0, %s25
      %s29 = sphi 0, %s28
      %s45 = sphi 0, %s29
      %s49 = sphi 0, %s49
      %s51 = sphi 0, %s49
      %s52 = sphi 0, %s51
      %s66 = sphi 0, %s52
      %s70 = sphi 0, %s70
      %s72 = sphi 0, %s70
      %s73 = sphi 0, %s72
      %s87 = sphi 0, %s73
      %s91 = sphi 0, %s91
      %s93 = sphi 0, %s91
      %s94 = sphi 0, %s93
      %s108 = sphi 0, %s94
      %s114 = sphi 0, %s116
      %s117 = sphi 0, %s114
      %s118 = sphi 0, %s117
      %s134 = sphi 0, %s118
      %s140 = sphi 0, %s142
      %s143 = sphi 0, %s140
      %s144 = sphi 0, %s143
      %s160 = sphi 0, %s144
    $region4: #{tpu_custom_call.1} parent=1 // loop_header_branch
      %18 = sbr.rel (%p16) target = $region8
    $region5: #{tpu_custom_call.1} parent=1 // loop_body
      %s20 = ssub.s32 %s15, 1
      %s21 = ssub.s32 %s15, 2
      %s22 = sadd.s32 %s15, 1
      %s23 = ssub.s32 %s15, %s22
      %p24 = scmp.eq.s32.totalorder %s23, 0
      %s26 = sadd.s32 %s25, 1
      %s27 = scalar_select %p24, %s25, %s26
      %p30 = pneg %p24
      %p31 = scmp.eq.s32.totalorder %s15, 1
      %p32 = por %p30, %p31
      %p33 = scmp.ne.s32.totalorder %s25, %s28
      %p34 = scmp.eq.s32.totalorder %s15, 0
      %p35 = por %p33, %p34
      %p36 = scmp.ne.s32.totalorder %s25, %s28
      %p37 = scmp.eq.s32.totalorder %s20, 1
      %p38 = por %p36, %p37
      %p39 = scmp.ne.s32.totalorder %s28, %s29
      %p40 = scmp.eq.s32.totalorder %s20, 0
      %p41 = por %p39, %p40
      %p42 = scmp.ne.s32.totalorder %s28, %s29
      %p43 = scmp.eq.s32.totalorder %s21, 1
      %p44 = por %p42, %p43
      %p46 = scmp.ne.s32.totalorder %s29, %s45
      %p47 = scmp.eq.s32.totalorder %s21, 0
      %p48 = por %p46, %p47
      %s50 = sadd.s32 %s49, 1
      %p53 = scmp.eq.s32.totalorder %s15, 1
      %p54 = scmp.ne.s32.totalorder %s49, %s51
      %p55 = scmp.eq.s32.totalorder %s15, 0
      %p56 = por %p54, %p55
      %p57 = scmp.ne.s32.totalorder %s49, %s51
      %p58 = scmp.eq.s32.totalorder %s20, 1
      %p59 = por %p57, %p58
      %p60 = scmp.ne.s32.totalorder %s51, %s52
      %p61 = scmp.eq.s32.totalorder %s20, 0
      %p62 = por %p60, %p61
      %p63 = scmp.ne.s32.totalorder %s51, %s52
      %p64 = scmp.eq.s32.totalorder %s21, 1
      %p65 = por %p63, %p64
      %p67 = scmp.ne.s32.totalorder %s52, %s66
      %p68 = scmp.eq.s32.totalorder %s21, 0
      %p69 = por %p67, %p68
      %s71 = sadd.s32 %s70, 1
      %p74 = scmp.eq.s32.totalorder %s15, 1
      %p75 = scmp.ne.s32.totalorder %s70, %s72
      %p76 = scmp.eq.s32.totalorder %s15, 0
      %p77 = por %p75, %p76
      %p78 = scmp.ne.s32.totalorder %s70, %s72
      %p79 = scmp.eq.s32.totalorder %s20, 1
      %p80 = por %p78, %p79
      %p81 = scmp.ne.s32.totalorder %s72, %s73
      %p82 = scmp.eq.s32.totalorder %s20, 0
      %p83 = por %p81, %p82
      %p84 = scmp.ne.s32.totalorder %s72, %s73
      %p85 = scmp.eq.s32.totalorder %s21, 1
      %p86 = por %p84, %p85
      %p88 = scmp.ne.s32.totalorder %s73, %s87
      %p89 = scmp.eq.s32.totalorder %s21, 0
      %p90 = por %p88, %p89
      %s92 = sadd.s32 %s91, 1
      %p95 = scmp.eq.s32.totalorder %s15, 1
      %p96 = scmp.ne.s32.totalorder %s91, %s93
      %p97 = scmp.eq.s32.totalorder %s15, 0
      %p98 = por %p96, %p97
      %p99 = scmp.ne.s32.totalorder %s91, %s93
      %p100 = scmp.eq.s32.totalorder %s20, 1
      %p101 = por %p99, %p100
      %p102 = scmp.ne.s32.totalorder %s93, %s94
      %p103 = scmp.eq.s32.totalorder %s20, 0
      %p104 = por %p102, %p103
      %p105 = scmp.ne.s32.totalorder %s93, %s94
      %p106 = scmp.eq.s32.totalorder %s21, 1
      %p107 = por %p105, %p106
      %p109 = scmp.ne.s32.totalorder %s94, %s108
      %p110 = scmp.eq.s32.totalorder %s21, 0
      %p111 = por %p109, %p110
      %s112 = ssub.s32 %s15, %s22
      %p113 = scmp.eq.s32.totalorder %s112, 0
      %s115 = sadd.s32 %s114, 1
      %s116 = scalar_select %p113, %s114, %s115
      %p119 = pneg %p113
      %p120 = scmp.eq.s32.totalorder %s15, 1
      %p121 = por %p119, %p120
      %p122 = scmp.ne.s32.totalorder %s114, %s117
      %p123 = scmp.eq.s32.totalorder %s15, 0
      %p124 = por %p122, %p123
      %p125 = scmp.ne.s32.totalorder %s114, %s117
      %p126 = scmp.eq.s32.totalorder %s20, 1
      %p127 = por %p125, %p126
      %p128 = scmp.ne.s32.totalorder %s117, %s118
      %p129 = scmp.eq.s32.totalorder %s20, 0
      %p130 = por %p128, %p129
      %p131 = scmp.ne.s32.totalorder %s117, %s118
      %p132 = scmp.eq.s32.totalorder %s21, 1
      %p133 = por %p131, %p132
      %p135 = scmp.ne.s32.totalorder %s118, %s134
      %p136 = scmp.eq.s32.totalorder %s21, 0
      %p137 = por %p135, %p136
      %s138 = ssub.s32 %s15, %s22
      %p139 = scmp.eq.s32.totalorder %s138, 0
      %s141 = sadd.s32 %s140, 1
      %s142 = scalar_select %p139, %s140, %s141
      %p145 = pneg %p139
      %p146 = scmp.eq.s32.totalorder %s15, 1
      %p147 = por %p145, %p146
      %p148 = scmp.ne.s32.totalorder %s140, %s143
      %p149 = scmp.eq.s32.totalorder %s15, 0
      %p150 = por %p148, %p149
      %p151 = scmp.ne.s32.totalorder %s140, %s143
      %p152 = scmp.eq.s32.totalorder %s20, 1
      %p153 = por %p151, %p152
      %p154 = scmp.ne.s32.totalorder %s143, %s144
      %p155 = scmp.eq.s32.totalorder %s20, 0
      %p156 = por %p154, %p155
      %p157 = scmp.ne.s32.totalorder %s143, %s144
      %p158 = scmp.eq.s32.totalorder %s21, 1
      %p159 = por %p157, %p158
      %p161 = scmp.ne.s32.totalorder %s144, %s160
      %p162 = scmp.eq.s32.totalorder %s21, 0
      %p163 = por %p161, %p162
      %p164 = scmp.le.s32.totalorder 1, %s15
      %p165 = scmp.lt.s32.totalorder %s15, 3
      %p166 = pnand %p164, %p165
      %p167 = pneg %p166
      // Predicated region
      $region9: #{tpu_custom_call.1} parent=5 // pred_check
        _
      $region10: #{tpu_custom_call.1} parent=5 // pred_check_branch
        %169 = sbr.rel (%p166) target = $region12
      $region11: #{tpu_custom_call.1} parent=5 // pred_region
        %s170 = ssub.s32 %s15, 1
        // Predicated region
        $region13: #{tpu_custom_call.1} parent=11 // pred_check
          %p171 = pneg %p62
        $region14: #{tpu_custom_call.1} parent=11 // pred_check_branch
          %173 = sbr.rel (%p171) target = $region16
        $region15: #{tpu_custom_call.1} parent=11 // pred_region
          %s175 = ssub.s32 512, 512
          %176 = vsyncadd [#allocation3], %s175
          %s177 = sshll.u32 [#allocation2], 4
          %s178 = int_to_ptr.vmem [resolvable:$true] %s177
          %183 = dma.hbm_to_vmem [thread:$0]  %s1, 512, %s178, [#allocation3], 128, 128, 8
        $region16: #{tpu_custom_call.1} parent=11 // pred_fallthru
          _
        // Predicated region
        $region17: #{tpu_custom_call.1} parent=11 // pred_check
          %p184 = pneg %p83
        $region18: #{tpu_custom_call.1} parent=11 // pred_check_branch
          %186 = sbr.rel (%p184) target = $region20
        $region19: #{tpu_custom_call.1} parent=11 // pred_region
          _
        $region20: #{tpu_custom_call.1} parent=11 // pred_fallthru
          _
        // Predicated region
        $region21: #{tpu_custom_call.1} parent=11 // pred_check
          %p187 = pneg %p104
        $region22: #{tpu_custom_call.1} parent=11 // pred_check_branch
          %189 = sbr.rel (%p187) target = $region24
        $region23: #{tpu_custom_call.1} parent=11 // pred_region
          _
        $region24: #{tpu_custom_call.1} parent=11 // pred_fallthru
          _
      $region12: #{tpu_custom_call.1} parent=5 // pred_fallthru
        _
      %p190 = scmp.lt.s32.totalorder %s15, 2
      // Predicated region
      $region25: #{tpu_custom_call.1} parent=5 // pred_check
        %p191 = pneg %p190
      $region26: #{tpu_custom_call.1} parent=5 // pred_check_branch
        %193 = sbr.rel (%p191) target = $region28
      $region27: #{tpu_custom_call.1} parent=5 // pred_region
        // Predicated region
        $region29: #{tpu_custom_call.1} parent=27 // pred_check
          %p194 = pneg %p35
        $region30: #{tpu_custom_call.1} parent=27 // pred_check_branch
          %196 = sbr.rel (%p194) target = $region32
        $region31: #{tpu_custom_call.1} parent=27 // pred_region
          %p197 = scmp.lt.s32.totalorder %s15, 1
          %s198 = scalar_select %p197, %s15, 1
          %s199 = smul.addr %s198, 8
          %s200 = scalar_lea.vmem %s0, %s199
        $region32: #{tpu_custom_call.1} parent=27 // pred_fallthru
          _
        // Predicated region
        $region33: #{tpu_custom_call.1} parent=27 // pred_check
          %p201 = pneg %p124
        $region34: #{tpu_custom_call.1} parent=27 // pred_check_branch
          %203 = sbr.rel (%p201) target = $region36
        $region35: #{tpu_custom_call.1} parent=27 // pred_region
          %p204 = scmp.lt.s32.totalorder %s15, 1
          %s205 = scalar_select %p204, %s15, 1
          %s206 = smul.addr %s205, 8
          %s207 = scalar_lea.vmem %s4, %s206
        $region36: #{tpu_custom_call.1} parent=27 // pred_fallthru
          _
      $region28: #{tpu_custom_call.1} parent=5 // pred_fallthru
        _
      %p208 = scmp.le.s32.totalorder 1, %s15
      %p209 = scmp.lt.s32.totalorder %s15, 3
      %p210 = pnand %p208, %p209
      %p211 = pneg %p210
      // Predicated region
      $region37: #{tpu_custom_call.1} parent=5 // pred_check
        _
      $region38: #{tpu_custom_call.1} parent=5 // pred_check_branch
        %213 = sbr.rel (%p210) target = $region40
      $region39: #{tpu_custom_call.1} parent=5 // pred_region
        %s214 = ssub.s32 %s15, 1
        // Predicated region
        $region41: #{tpu_custom_call.1} parent=39 // pred_check
          %p215 = pneg %p62
        $region42: #{tpu_custom_call.1} parent=39 // pred_check_branch
          %217 = sbr.rel (%p215) target = $region44
        $region43: #{tpu_custom_call.1} parent=39 // pred_region
          %218 = dma.done [#allocation3], 512
        $region44: #{tpu_custom_call.1} parent=39 // pred_fallthru
          _
        %p219 = scmp.lt.s32.totalorder %s20, 1
        %s220 = scalar_select %p219, %s20, 1
        %s221 = smul.addr %s220, 8
        %s222 = scalar_lea.vmem %s0, %s221
        %p223 = pneg %p41
        %p224 = pneg %p38
        %p225 = pneg %p62
        %p226 = pneg %p59
        %p227 = pneg %p83
        %p228 = pneg %p80
        %p229 = pneg %p104
        %p230 = pneg %p101
        %p231 = scmp.lt.s32.totalorder %s20, 1
        %s232 = scalar_select %p231, %s20, 1
        %s233 = smul.addr %s232, 8
        %s234 = scalar_lea.vmem %s4, %s233
        %p235 = pneg %p130
        %p236 = pneg %p127
        %p237 = pneg %p156
        %p238 = pneg %p153
        %s239 = sand.u32 %s143, 1
        %s240 = scalar_lea.sflag [#allocation4], %s239
        %s241 = sand.u32 %s143, 1
        %s242 = smul.addr %s241, 8
        %s243 = scalar_lea.vmem [#allocation5], %s242
        %p244 = scmp.lt.s32.totalorder %s20, 1
        %s245 = scalar_select %p244, %s20, 1
        %s246 = smul.addr %s245, 8
        %s247 = scalar_lea.vmem %s0, %s246
        %p248 = scmp.lt.s32.totalorder %s20, 1
        %s249 = scalar_select %p248, %s20, 1
        %s250 = smul.addr %s249, 8
        %s251 = scalar_lea.vmem %s4, %s250
        %v252 = vld [vmem:[%s247] sm:$0xff]
        %v253 = vld [vmem:[#allocation2] sm:$0xff]
        %v254 = vld [vmem:[#allocation2 + $0x8] sm:$0xff]
        %v255 = vld [vmem:[#allocation2 + $0x10] sm:$0xff]
        %v256 = vld [vmem:[#allocation2 + $0x18] sm:$0xff]
        %vm257 = vcmask 261120
        %v259 = vsel %vm257, %v252, 0
        %261 = vmatprep.subr.mxu0 0.0
        %262 = vmatpush1.msra.mxu0 0.0
        %263 = vmatprep.subr.mxu0 0.0
        %264 = vmatpush1.msra.mxu0 0.0
        %265 = vmatprep.subr.mxu0 0.0
        %266 = vmatpush1.msra.mxu0 0.0
        %267 = vmatprep.subr.mxu0 0.0
        %268 = vmatpush1.msra.mxu0 0.0
        %269 = vmatprep.subr.mxu0 0.0
        %270 = vmatpush1.msra.mxu0 0.0
        %271 = vmatprep.subr.mxu0 0.0
        %272 = vmatpush1.msra.mxu0 0.0
        %273 = vmatprep.subr.mxu0 0.0
        %274 = vmatpush1.msra.mxu0 0.0
        %275 = vmatprep.subr.mxu0 0.0
        %276 = vmatpush1.msra.mxu0 0.0
        %277 = vmatprep.subr.mxu0 0.0
        %278 = vmatpush1.msra.mxu0 0.0
        %279 = vmatprep.subr.mxu0 0.0
        %280 = vmatpush1.msra.mxu0 0.0
        %281 = vmatprep.subr.mxu0 0.0
        %282 = vmatpush1.msra.mxu0 0.0
        %283 = vmatprep.subr.mxu0 0.0
        %284 = vmatpush1.msra.mxu0 0.0
        %285 = vmatprep.subr.mxu0 0.0
        %286 = vmatpush1.msra.mxu0 %v256
        %287 = vmatprep.subr.mxu0 0.0
        %288 = vmatpush1.msra.mxu0 %v255
        %289 = vmatprep.subr.mxu0 0.0
        %290 = vmatpush1.msra.mxu0 %v254
        %291 = vmatprep.subr.mxu0 0.0
        %292 = vmatpush1.msra.mxu0 %v253
        %293 = vmatprep.subr.mxu0 0.0
        %294 = vmatpush2.msra.mxu0 0.0
        %295 = vmatprep.subr.mxu0 0.0
        %296 = vmatpush2.msra.mxu0 0.0
        %297 = vmatprep.subr.mxu0 0.0
        %298 = vmatpush2.msra.mxu0 0.0
        %299 = vmatprep.subr.mxu0 0.0
        %300 = vmatpush2.msra.mxu0 0.0
        %301 = vmatprep.subr.mxu0 0.0
        %302 = vmatpush2.msra.mxu0 0.0
        %303 = vmatprep.subr.mxu0 0.0
        %304 = vmatpush2.msra.mxu0 0.0
        %305 = vmatprep.subr.mxu0 0.0
        %306 = vmatpush2.msra.mxu0 0.0
        %307 = vmatprep.subr.mxu0 0.0
        %308 = vmatpush2.msra.mxu0 0.0
        %309 = vmatprep.subr.mxu0 0.0
        %310 = vmatpush2.msra.mxu0 0.0
        %311 = vmatprep.subr.mxu0 0.0
        %312 = vmatpush2.msra.mxu0 0.0
        %313 = vmatprep.subr.mxu0 0.0
        %314 = vmatpush2.msra.mxu0 0.0
        %315 = vmatprep.subr.mxu0 0.0
        %316 = vmatpush2.msra.mxu0 0.0
        %317 = vmatprep.subr.mxu0 0.0
        %318 = vmatpush2.msra.mxu0 0.0
        %319 = vmatprep.subr.mxu0 0.0
        %320 = vmatpush2.msra.mxu0 0.0
        %321 = vmatprep.subr.mxu0 0.0
        %322 = vmatpush2.msra.mxu0 0.0
        %323 = vmatprep.subr.mxu0 0.0
        %324 = vmatpush2.msra.mxu0 0.0
        %325 = vmatprep.mubr.f32.mxu0 0.0
        %326 = vmatmul.mubr.f32.gmra.mxu0 %v259
        %v327 = vpop.f32.mrf.mxu0
        %v328 = vadd.f32 0.0, %v327
        %v329 = vpop.f32.mrf.mxu0
        %330 = vdwg.mxu0
        %331 = vadd.xlane.f32.xlu0 %v328
        %v332 = vpop.xlane.xlu0 %331
        %v333 = vrcp.pop 128.0
        %v334 = vmul.f32 %v332, %v333
        %v335 = vsub.f32 %v328, %v334
        %v336 = vmul.f32 %v335, %v335
        %337 = vadd.xlane.f32.xlu0 %v336
        %v338 = vpop.xlane.xlu0 %337
        %v339 = vmul.f32 %v338, %v333
        %v340 = vadd.f32 %v339, 1e-05
        %v341 = vrsqrt.pop %v340
        %v342 = vmul.f32 %v335, %v341
        %v343 = vld [vmem:[%s2] sm:$0x1]
        %v345 = vlaneseq
        %v346 = vshrl.u32 %v345, 7
        %v347 = vsub.s32 0, %v346
        %v348 = vrot.slane %v343, %v347
        %v350 = vmul.f32 %v342, %v348
        %v351 = vld [vmem:[%s3] sm:$0x1]
        %v353 = vlaneseq
        %v354 = vshrl.u32 %v353, 7
        %v355 = vsub.s32 0, %v354
        %v356 = vrot.slane %v351, %v355
        %v358 = vadd.f32 %v350, %v356
        %v359 = vld [vmem:[%s251] sm:$0xff]
        %361 = vset.pattern.permute.xlu0 0
        %362 = vperm.xlu0 %361, %v359
        %v363 = vpop.permute.xlu0 %362
        %v365 = vmul.f32 %v358, %v363
        %366 = vst [vmem:[%s243] sm:$0xff] %v365
        %s367 = sand.u32 %s143, 1
        %s368 = scalar_lea.sflag [#allocation4], %s367
        %s369 = sand.u32 %s143, 1
        %s370 = smul.addr %s369, 8
        %s371 = scalar_lea.vmem [#allocation5], %s370
        // Predicated region
        $region45: #{tpu_custom_call.1} parent=39 // pred_check
          %p372 = pneg %p153
        $region46: #{tpu_custom_call.1} parent=39 // pred_check_branch
          %374 = sbr.rel (%p372) target = $region48
        $region47: #{tpu_custom_call.1} parent=39 // pred_region
          %s376 = ssub.s32 128, 128
          %377 = vsyncadd %s368, %s376
          %s378 = smul.addr %s20, 128
          %s379 = scalar_lea.hbm %s5, %s378
          %s381 = sshll.u32 %s371, 4
          %s382 = int_to_ptr.vmem [resolvable:$true] %s381
          %384 = dma.vmem_to_hbm [thread:$0]  %s382, 128, %s379, %s368
        $region48: #{tpu_custom_call.1} parent=39 // pred_fallthru
          _
      $region40: #{tpu_custom_call.1} parent=5 // pred_fallthru
        _
      %p385 = scmp.le.s32.totalorder 2, %s15
      // Predicated region
      $region49: #{tpu_custom_call.1} parent=5 // pred_check
        %p386 = pneg %p385
      $region50: #{tpu_custom_call.1} parent=5 // pred_check_branch
        %388 = sbr.rel (%p386) target = $region52
      $region51: #{tpu_custom_call.1} parent=5 // pred_region
        %s389 = ssub.s32 %s15, 2
        // Predicated region
        $region53: #{tpu_custom_call.1} parent=51 // pred_check
          %p390 = pneg %p159
        $region54: #{tpu_custom_call.1} parent=51 // pred_check_branch
          %392 = sbr.rel (%p390) target = $region56
        $region55: #{tpu_custom_call.1} parent=51 // pred_region
          %s393 = sand.u32 %s144, 1
          %s394 = scalar_lea.sflag [#allocation4], %s393
          %s395 = sand.u32 %s144, 1
          %s396 = smul.addr %s395, 8
          %s397 = scalar_lea.vmem [#allocation5], %s396
          %398 = dma.done %s394, 128
        $region56: #{tpu_custom_call.1} parent=51 // pred_fallthru
          _
      $region52: #{tpu_custom_call.1} parent=5 // pred_fallthru
        _
    $region6: #{tpu_custom_call.1} parent=1 // loop_footer
      %s19 = sadd.s32 1, %s15
    $region7: #{tpu_custom_call.1} parent=1 // loop_footer_branch
      %14 = sbr.rel target = $region3
    $region8: #{tpu_custom_call.1} parent=1 // loop_exit
      _
    %399 = vsyncpa [#allocation3], 1
    %s400 = scalar_lea.sflag [#allocation3], 1
    %401 = vsyncpa %s400, 1
    %402 = vsyncpa [#allocation4], 1
    %s403 = scalar_lea.sflag [#allocation4], 1
    %404 = vsyncpa %s403, 1

</llo_original>
